<compile_context>
chip_gen: v5e
topology: v5e:2x2
jax: 0.10.0
libtpu: 0.0.40
codegen_flags: <defaults>
</compile_context>

<pallas_src>
import jax
import jax.numpy as jnp
from jax.experimental import pallas as pl
from jax.experimental.pallas import tpu as pltpu

F = 3          # in_features == out_features of both Linear layers
LANES = 128    # vreg lane width
SUBLANES = 8   # vreg sublane count (f32)


def _mlp_kernel(w1_ref, b1_ref, w2_ref, b2_ref, x_ref, o_ref):
    # x_ref / o_ref : (F, tr, 128) -- each feature channel is a dense slab.
    # w*_ref : (F, F) in SMEM, b*_ref : (F,) in SMEM -> scalar loads that
    # broadcast against the (tr, 128) batch slabs on the VPU.
    xs = [x_ref[k] for k in range(F)]               # F dense (tr, 128) slabs

    # Layer 1: h_j = relu(b1[j] + sum_k w1[j,k] * x_k)  -- unrolled VPU MACs.
    h = []
    for j in range(F):
        acc = b1_ref[j] + w1_ref[j, 0] * xs[0]
        for k in range(1, F):
            acc = acc + w1_ref[j, k] * xs[k]
        h.append(jnp.maximum(acc, 0.0))

    # Layer 2: y_j = b2[j] + sum_k w2[j,k] * h_k ; store each plane directly
    # from its accumulator (no concat / temporary).
    for j in range(F):
        acc = b2_ref[j] + w2_ref[j, 0] * h[0]
        for k in range(1, F):
            acc = acc + w2_ref[j, k] * h[k]
        o_ref[j] = acc.astype(o_ref.dtype)


def sat_simple_net(x, w1, b1, w2, b2, *, target_rows=1024):
    """Forward pass of SatSimpleNet.

    x:  (B, 3) float32            (PyTorch nn.Linear input layout)
    w1: (3, 3) float32            (PyTorch layout: [out_features, in_features])
    b1: (3,)   float32
    w2: (3, 3) float32
    b2: (3,)   float32
    returns (B, 3) float32

    target_rows: rows (of 128 batch elements each) per grid step; multiple of 8.
                 Default 1024 -> ~1.5 MB per input block per step.
    """
    B, f_in = x.shape
    assert f_in == F

    # --- choose a sublane-aligned tile of batch rows --------------------------
    target_rows = max(SUBLANES, (int(target_rows) // SUBLANES) * SUBLANES)
    rows_needed = pl.cdiv(B, LANES)
    rows8 = pl.cdiv(rows_needed, SUBLANES) * SUBLANES
    tr = min(target_rows, rows8)                        # rows per block (mult of 8)
    rows_padded = pl.cdiv(rows8, tr) * tr               # grid divides exactly
    bp = rows_padded * LANES
    grid = (rows_padded // tr,)

    # --- feature-major, lane-dense layout: (F, rows_padded, 128) --------------
    xt = jnp.transpose(x)                               # (F, B)
    if bp != B:
        xt = jnp.pad(xt, ((0, 0), (0, bp - B)))
    x3 = xt.reshape(F, rows_padded, LANES)

    # --- VMEM budget: 2x double-buffered (in + out) blocks + headroom ---------
    block_bytes = F * tr * LANES * x.dtype.itemsize
    vmem_limit = int(min(100 << 20, max(32 << 20, 4 * block_bytes + (8 << 20))))

    smem = lambda: pl.BlockSpec(memory_space=pltpu.MemorySpace.SMEM)

    out3 = pl.pallas_call(
        _mlp_kernel,
        out_shape=jax.ShapeDtypeStruct((F, rows_padded, LANES), x.dtype),
        grid=grid,
        in_specs=[
            smem(),                                          # w1 (3,3), resident
            smem(),                                          # b1 (3,)
            smem(),                                          # w2 (3,3)
            smem(),                                          # b2 (3,)
            pl.BlockSpec((F, tr, LANES), lambda i: (0, i, 0)),   # x slab, pipelined
        ],
        out_specs=pl.BlockSpec((F, tr, LANES), lambda i: (0, i, 0)),
        compiler_params=pltpu.CompilerParams(
            dimension_semantics=("parallel",),               # megacore-shardable
            vmem_limit_bytes=vmem_limit,
        ),
    )(w1, b1, w2, b2, x3)

    # Padded tail lanes hold b2 + w2*relu(b1) garbage; the [:B] slice drops them.
    return jnp.transpose(out3.reshape(F, bp)[:, :B])         # back to (B, 3)


def _reference(x, w1, b1, w2, b2):
    h = jnp.maximum(x @ w1.T + b1, 0.0)
    return h @ w2.T + b2


if __name__ == "__main__":
    key = jax.random.PRNGKey(0)
    kx, kw1, kb1, kw2, kb2 = jax.random.split(key, 5)

    B = 8
    # Deterministic parameter init matching nn.Linear's default scale.
    bound = 1.0 / jnp.sqrt(jnp.float32(F))
    x = jax.random.normal(kx, (B, F), dtype=jnp.float32)
    w1 = jax.random.uniform(kw1, (F, F), jnp.float32, -bound, bound)
    b1 = jax.random.uniform(kb1, (F,), jnp.float32, -bound, bound)
    w2 = jax.random.uniform(kw2, (F, F), jnp.float32, -bound, bound)
    b2 = jax.random.uniform(kb2, (F,), jnp.float32, -bound, bound)

    out = jax.block_until_ready(sat_simple_net(x, w1, b1, w2, b2))
    ref = _reference(x, w1, b1, w2, b2)
    assert out.shape == (B, F)
    assert jnp.allclose(out, ref, atol=1e-5, rtol=1e-5), "mismatch vs reference (B=8)"

    # Ragged batch with a small tile to exercise the multi-step pipelined grid
    # (grid = 3) cheaply; production use keeps the default target_rows=1024.
    B2 = 3000
    x2 = jax.random.normal(jax.random.PRNGKey(1), (B2, F), dtype=jnp.float32)
    out2 = jax.block_until_ready(
        sat_simple_net(x2, w1, b1, w2, b2, target_rows=8))
    ref2 = _reference(x2, w1, b1, w2, b2)
    assert out2.shape == (B2, F)
    assert jnp.allclose(out2, ref2, atol=1e-5, rtol=1e-5), "mismatch vs reference (B=3000)"

    print("KERNEL_OK")
</pallas_src>

<mosaic_0001>
module attributes {stable_mosaic.version = 11 : i64} {
  func.func @_mlp_kernel(%arg0: i32, %arg1: memref<3x3xf32, #tpu.memory_space<smem>>, %arg2: memref<3xf32, #tpu.memory_space<smem>>, %arg3: memref<3x3xf32, #tpu.memory_space<smem>>, %arg4: memref<3xf32, #tpu.memory_space<smem>>, %arg5: memref<3x8x128xf32, #tpu.memory_space<vmem>>, %arg6: memref<3x8x128xf32, #tpu.memory_space<vmem>>) attributes {dimension_semantics = [#tpu.dimension_semantics<parallel>], iteration_bounds = array<i64: 1>, scalar_prefetch = 0 : i64, scratch_operands = 0 : i64, tpu.core_type = #tpu.core_type<tc>, window_params = [{transform_indices = @transform_0, window_bounds = array<i64: 3, 3>}, {transform_indices = @transform_1, window_bounds = array<i64: 3>}, {transform_indices = @transform_2, window_bounds = array<i64: 3, 3>}, {transform_indices = @transform_3, window_bounds = array<i64: 3>}, {transform_indices = @transform_4, window_bounds = array<i64: 3, 8, 128>}, {transform_indices = @transform_5, window_bounds = array<i64: 3, 8, 128>}]} {
    %c0 = arith.constant 0 : index
    %c0_0 = arith.constant 0 : index
    %c0_1 = arith.constant 0 : index
    %0 = vector.load %arg5[%c0, %c0_0, %c0_1] : memref<3x8x128xf32, #tpu.memory_space<vmem>>, vector<1x8x128xf32>
    %1 = vector.shape_cast %0 : vector<1x8x128xf32> to vector<8x128xf32>
    %c1 = arith.constant 1 : index
    %c0_2 = arith.constant 0 : index
    %c0_3 = arith.constant 0 : index
    %2 = vector.load %arg5[%c1, %c0_2, %c0_3] : memref<3x8x128xf32, #tpu.memory_space<vmem>>, vector<1x8x128xf32>
    %3 = vector.shape_cast %2 : vector<1x8x128xf32> to vector<8x128xf32>
    %c2 = arith.constant 2 : index
    %c0_4 = arith.constant 0 : index
    %c0_5 = arith.constant 0 : index
    %4 = vector.load %arg5[%c2, %c0_4, %c0_5] : memref<3x8x128xf32, #tpu.memory_space<vmem>>, vector<1x8x128xf32>
    %5 = vector.shape_cast %4 : vector<1x8x128xf32> to vector<8x128xf32>
    %c0_6 = arith.constant 0 : index
    %6 = memref.load %arg2[%c0_6] : memref<3xf32, #tpu.memory_space<smem>>
    %c0_7 = arith.constant 0 : index
    %c0_8 = arith.constant 0 : index
    %7 = memref.load %arg1[%c0_7, %c0_8] : memref<3x3xf32, #tpu.memory_space<smem>>
    %8 = vector.broadcast %7 : f32 to vector<8x128xf32>
    %9 = arith.mulf %8, %1 : vector<8x128xf32>
    %10 = vector.broadcast %6 : f32 to vector<8x128xf32>
    %11 = arith.addf %10, %9 : vector<8x128xf32>
    %c0_9 = arith.constant 0 : index
    %c1_10 = arith.constant 1 : index
    %12 = memref.load %arg1[%c0_9, %c1_10] : memref<3x3xf32, #tpu.memory_space<smem>>
    %13 = vector.broadcast %12 : f32 to vector<8x128xf32>
    %14 = arith.mulf %13, %3 : vector<8x128xf32>
    %15 = arith.addf %11, %14 : vector<8x128xf32>
    %c0_11 = arith.constant 0 : index
    %c2_12 = arith.constant 2 : index
    %16 = memref.load %arg1[%c0_11, %c2_12] : memref<3x3xf32, #tpu.memory_space<smem>>
    %17 = vector.broadcast %16 : f32 to vector<8x128xf32>
    %18 = arith.mulf %17, %5 : vector<8x128xf32>
    %19 = arith.addf %15, %18 : vector<8x128xf32>
    %cst = arith.constant 0.000000e+00 : f32
    %20 = vector.broadcast %cst : f32 to vector<8x128xf32>
    %21 = arith.maximumf %19, %20 : vector<8x128xf32>
    %c1_13 = arith.constant 1 : index
    %22 = memref.load %arg2[%c1_13] : memref<3xf32, #tpu.memory_space<smem>>
    %c1_14 = arith.constant 1 : index
    %c0_15 = arith.constant 0 : index
    %23 = memref.load %arg1[%c1_14, %c0_15] : memref<3x3xf32, #tpu.memory_space<smem>>
    %24 = vector.broadcast %23 : f32 to vector<8x128xf32>
    %25 = arith.mulf %24, %1 : vector<8x128xf32>
    %26 = vector.broadcast %22 : f32 to vector<8x128xf32>
    %27 = arith.addf %26, %25 : vector<8x128xf32>
    %c1_16 = arith.constant 1 : index
    %c1_17 = arith.constant 1 : index
    %28 = memref.load %arg1[%c1_16, %c1_17] : memref<3x3xf32, #tpu.memory_space<smem>>
    %29 = vector.broadcast %28 : f32 to vector<8x128xf32>
    %30 = arith.mulf %29, %3 : vector<8x128xf32>
    %31 = arith.addf %27, %30 : vector<8x128xf32>
    %c1_18 = arith.constant 1 : index
    %c2_19 = arith.constant 2 : index
    %32 = memref.load %arg1[%c1_18, %c2_19] : memref<3x3xf32, #tpu.memory_space<smem>>
    %33 = vector.broadcast %32 : f32 to vector<8x128xf32>
    %34 = arith.mulf %33, %5 : vector<8x128xf32>
    %35 = arith.addf %31, %34 : vector<8x128xf32>
    %cst_20 = arith.constant 0.000000e+00 : f32
    %36 = vector.broadcast %cst_20 : f32 to vector<8x128xf32>
    %37 = arith.maximumf %35, %36 : vector<8x128xf32>
    %c2_21 = arith.constant 2 : index
    %38 = memref.load %arg2[%c2_21] : memref<3xf32, #tpu.memory_space<smem>>
    %c2_22 = arith.constant 2 : index
    %c0_23 = arith.constant 0 : index
    %39 = memref.load %arg1[%c2_22, %c0_23] : memref<3x3xf32, #tpu.memory_space<smem>>
    %40 = vector.broadcast %39 : f32 to vector<8x128xf32>
    %41 = arith.mulf %40, %1 : vector<8x128xf32>
    %42 = vector.broadcast %38 : f32 to vector<8x128xf32>
    %43 = arith.addf %42, %41 : vector<8x128xf32>
    %c2_24 = arith.constant 2 : index
    %c1_25 = arith.constant 1 : index
    %44 = memref.load %arg1[%c2_24, %c1_25] : memref<3x3xf32, #tpu.memory_space<smem>>
    %45 = vector.broadcast %44 : f32 to vector<8x128xf32>
    %46 = arith.mulf %45, %3 : vector<8x128xf32>
    %47 = arith.addf %43, %46 : vector<8x128xf32>
    %c2_26 = arith.constant 2 : index
    %c2_27 = arith.constant 2 : index
    %48 = memref.load %arg1[%c2_26, %c2_27] : memref<3x3xf32, #tpu.memory_space<smem>>
    %49 = vector.broadcast %48 : f32 to vector<8x128xf32>
    %50 = arith.mulf %49, %5 : vector<8x128xf32>
    %51 = arith.addf %47, %50 : vector<8x128xf32>
    %cst_28 = arith.constant 0.000000e+00 : f32
    %52 = vector.broadcast %cst_28 : f32 to vector<8x128xf32>
    %53 = arith.maximumf %51, %52 : vector<8x128xf32>
    %c0_29 = arith.constant 0 : index
    %54 = memref.load %arg4[%c0_29] : memref<3xf32, #tpu.memory_space<smem>>
    %c0_30 = arith.constant 0 : index
    %c0_31 = arith.constant 0 : index
    %55 = memref.load %arg3[%c0_30, %c0_31] : memref<3x3xf32, #tpu.memory_space<smem>>
    %56 = vector.broadcast %55 : f32 to vector<8x128xf32>
    %57 = arith.mulf %56, %21 : vector<8x128xf32>
    %58 = vector.broadcast %54 : f32 to vector<8x128xf32>
    %59 = arith.addf %58, %57 : vector<8x128xf32>
    %c0_32 = arith.constant 0 : index
    %c1_33 = arith.constant 1 : index
    %60 = memref.load %arg3[%c0_32, %c1_33] : memref<3x3xf32, #tpu.memory_space<smem>>
    %61 = vector.broadcast %60 : f32 to vector<8x128xf32>
    %62 = arith.mulf %61, %37 : vector<8x128xf32>
    %63 = arith.addf %59, %62 : vector<8x128xf32>
    %c0_34 = arith.constant 0 : index
    %c2_35 = arith.constant 2 : index
    %64 = memref.load %arg3[%c0_34, %c2_35] : memref<3x3xf32, #tpu.memory_space<smem>>
    %65 = vector.broadcast %64 : f32 to vector<8x128xf32>
    %66 = arith.mulf %65, %53 : vector<8x128xf32>
    %67 = arith.addf %63, %66 : vector<8x128xf32>
    %c0_36 = arith.constant 0 : index
    %c0_37 = arith.constant 0 : index
    %c0_38 = arith.constant 0 : index
    %68 = vector.load %arg6[%c0_36, %c0_37, %c0_38] : memref<3x8x128xf32, #tpu.memory_space<vmem>>, vector<1x8x128xf32>
    %69 = vector.shape_cast %68 : vector<1x8x128xf32> to vector<8x128xf32>
    %70 = vector.shape_cast %67 : vector<8x128xf32> to vector<1x8x128xf32>
    tpu.vector_store %arg6[%c0_36, %c0_37, %c0_38], %70 {strides = array<i32>} : memref<3x8x128xf32, #tpu.memory_space<vmem>>, vector<1x8x128xf32>,
    %c1_39 = arith.constant 1 : index
    %71 = memref.load %arg4[%c1_39] : memref<3xf32, #tpu.memory_space<smem>>
    %c1_40 = arith.constant 1 : index
    %c0_41 = arith.constant 0 : index
    %72 = memref.load %arg3[%c1_40, %c0_41] : memref<3x3xf32, #tpu.memory_space<smem>>
    %73 = vector.broadcast %72 : f32 to vector<8x128xf32>
    %74 = arith.mulf %73, %21 : vector<8x128xf32>
    %75 = vector.broadcast %71 : f32 to vector<8x128xf32>
    %76 = arith.addf %75, %74 : vector<8x128xf32>
    %c1_42 = arith.constant 1 : index
    %c1_43 = arith.constant 1 : index
    %77 = memref.load %arg3[%c1_42, %c1_43] : memref<3x3xf32, #tpu.memory_space<smem>>
    %78 = vector.broadcast %77 : f32 to vector<8x128xf32>
    %79 = arith.mulf %78, %37 : vector<8x128xf32>
    %80 = arith.addf %76, %79 : vector<8x128xf32>
    %c1_44 = arith.constant 1 : index
    %c2_45 = arith.constant 2 : index
    %81 = memref.load %arg3[%c1_44, %c2_45] : memref<3x3xf32, #tpu.memory_space<smem>>
    %82 = vector.broadcast %81 : f32 to vector<8x128xf32>
    %83 = arith.mulf %82, %53 : vector<8x128xf32>
    %84 = arith.addf %80, %83 : vector<8x128xf32>
    %c1_46 = arith.constant 1 : index
    %c0_47 = arith.constant 0 : index
    %c0_48 = arith.constant 0 : index
    %85 = vector.load %arg6[%c1_46, %c0_47, %c0_48] : memref<3x8x128xf32, #tpu.memory_space<vmem>>, vector<1x8x128xf32>
    %86 = vector.shape_cast %85 : vector<1x8x128xf32> to vector<8x128xf32>
    %87 = vector.shape_cast %84 : vector<8x128xf32> to vector<1x8x128xf32>
    tpu.vector_store %arg6[%c1_46, %c0_47, %c0_48], %87 {strides = array<i32>} : memref<3x8x128xf32, #tpu.memory_space<vmem>>, vector<1x8x128xf32>,
    %c2_49 = arith.constant 2 : index
    %88 = memref.load %arg4[%c2_49] : memref<3xf32, #tpu.memory_space<smem>>
    %c2_50 = arith.constant 2 : index
    %c0_51 = arith.constant 0 : index
    %89 = memref.load %arg3[%c2_50, %c0_51] : memref<3x3xf32, #tpu.memory_space<smem>>
    %90 = vector.broadcast %89 : f32 to vector<8x128xf32>
    %91 = arith.mulf %90, %21 : vector<8x128xf32>
    %92 = vector.broadcast %88 : f32 to vector<8x128xf32>
    %93 = arith.addf %92, %91 : vector<8x128xf32>
    %c2_52 = arith.constant 2 : index
    %c1_53 = arith.constant 1 : index
    %94 = memref.load %arg3[%c2_52, %c1_53] : memref<3x3xf32, #tpu.memory_space<smem>>
    %95 = vector.broadcast %94 : f32 to vector<8x128xf32>
    %96 = arith.mulf %95, %37 : vector<8x128xf32>
    %97 = arith.addf %93, %96 : vector<8x128xf32>
    %c2_54 = arith.constant 2 : index
    %c2_55 = arith.constant 2 : index
    %98 = memref.load %arg3[%c2_54, %c2_55] : memref<3x3xf32, #tpu.memory_space<smem>>
    %99 = vector.broadcast %98 : f32 to vector<8x128xf32>
    %100 = arith.mulf %99, %53 : vector<8x128xf32>
    %101 = arith.addf %97, %100 : vector<8x128xf32>
    %c2_56 = arith.constant 2 : index
    %c0_57 = arith.constant 0 : index
    %c0_58 = arith.constant 0 : index
    %102 = vector.load %arg6[%c2_56, %c0_57, %c0_58] : memref<3x8x128xf32, #tpu.memory_space<vmem>>, vector<1x8x128xf32>
    %103 = vector.shape_cast %102 : vector<1x8x128xf32> to vector<8x128xf32>
    %104 = vector.shape_cast %101 : vector<8x128xf32> to vector<1x8x128xf32>
    tpu.vector_store %arg6[%c2_56, %c0_57, %c0_58], %104 {strides = array<i32>} : memref<3x8x128xf32, #tpu.memory_space<vmem>>, vector<1x8x128xf32>,
    return
  }
  func.func @transform_0(%arg0: i32) -> (i32, i32) {
    %c0_i32 = arith.constant 0 : i32
    %c0_i32_0 = arith.constant 0 : i32
    %c0_i32_1 = arith.constant 0 : i32
    return %c0_i32, %c0_i32_0 : i32, i32
  }
  func.func @transform_1(%arg0: i32) -> i32 {
    %c0_i32 = arith.constant 0 : i32
    %c0_i32_0 = arith.constant 0 : i32
    return %c0_i32 : i32
  }
  func.func @transform_2(%arg0: i32) -> (i32, i32) {
    %c0_i32 = arith.constant 0 : i32
    %c0_i32_0 = arith.constant 0 : i32
    %c0_i32_1 = arith.constant 0 : i32
    return %c0_i32, %c0_i32_0 : i32, i32
  }
  func.func @transform_3(%arg0: i32) -> i32 {
    %c0_i32 = arith.constant 0 : i32
    %c0_i32_0 = arith.constant 0 : i32
    return %c0_i32 : i32
  }
  func.func @transform_4(%arg0: i32) -> (i32, i32, i32) {
    %c0_i32 = arith.constant 0 : i32
    %c0_i32_0 = arith.constant 0 : i32
    %c0_i32_1 = arith.constant 0 : i32
    return %c0_i32, %arg0, %c0_i32_0 : i32, i32, i32
  }
  func.func @transform_5(%arg0: i32) -> (i32, i32, i32) {
    %c0_i32 = arith.constant 0 : i32
    %c0_i32_0 = arith.constant 0 : i32
    %c0_i32_1 = arith.constant 0 : i32
    return %c0_i32, %arg0, %c0_i32_0 : i32, i32, i32
  }
}

</mosaic_0001>

<llo_original>
// kernel: tpu_custom_call.1
$region0: #{tpu_custom_call.1}
  #allocation0 [shape = 'u32[]', space=smem, size = 0x4, offset = 0x4, fixed_abs, tag = 'smem constant byte address 0x4 - core index']
  #allocation1 [shape = 'u32[72,128]{1,0:T(1,128)}', space=vmem, size = 0x9000, scoped, tag = 'internal scratch']
  %s0 = inlined_call_operand.hbm [shape: f32[3,3], index: 0, kind: input, shape index: {}]
  %s1 = inlined_call_operand.hbm [shape: f32[3], index: 1, kind: input, shape index: {}]
  %s2 = inlined_call_operand.hbm [shape: f32[3,3], index: 2, kind: input, shape index: {}]
  %s3 = inlined_call_operand.vmem [shape: f32[3], index: 3, kind: input, shape index: {}]
  %s4 = inlined_call_operand.hbm [shape: f32[3,8,128], index: 4, kind: input, shape index: {}]
  %s5 = inlined_call_operand.hbm [shape: f32[3,8,128], index: 5, kind: output, shape index: {}]
  %s6 = sld [smem:[#allocation0]]
  $region50: #{tpu_custom_call.1} parent=0
    _
  %s8 = ssub.s32 1, %s6
  %s9 = scalar_select 0, %s8, %s6
  $region1: #{tpu_custom_call.1} parent=0
    #allocation2 [shape = 'u8[2048]{0}', space=smem, size = 0x800, scoped, tag = 'input window, operand 0, single buffered']
    #allocation3 [shape = 's32[1]{0}', space=sflag, size = 0x4, scoped, tag = 'scoped memory for tpu_custom_call.1']
    #allocation4 [shape = 's32[1]{0}', space=sflag, size = 0x4, scoped, tag = 'scoped memory for tpu_custom_call.1']
    #allocation5 [shape = 's32[1]{0}', space=sflag, size = 0x4, scoped, tag = 'scoped memory for tpu_custom_call.1']
    #allocation6 [shape = 's32[1]{0}', space=sflag, size = 0x4, scoped, tag = 'scoped memory for tpu_custom_call.1']
    #allocation7 [shape = 'u8[512]{0}', space=smem, size = 0x200, scoped, tag = 'input window, operand 1, single buffered']
    #allocation8 [shape = 's32[1]{0}', space=sflag, size = 0x4, scoped, tag = 'scoped memory for tpu_custom_call.1']
    #allocation9 [shape = 'u8[2048]{0}', space=smem, size = 0x800, scoped, tag = 'input window, operand 2, single buffered']
    #allocation10 [shape = 'u8[512]{0}', space=smem, size = 0x200, scoped, tag = 'input window, operand 3, single buffered']
    #allocation11 [shape = 'u8[12288]{0}', space=vmem, size = 0x3000, scoped, tag = 'input window, operand 4, single buffered']
    #allocation12 [shape = 'u8[12288]{0}', space=vmem, size = 0x3000, scoped, tag = 'output window, operand 0, single buffered']
    %10 = vsyncpa [#allocation5], 0
    %11 = vsyncpa [#allocation8], 0
    %12 = vsyncpa [#allocation6], 0
    %13 = vsyncpa [#allocation3], 0
    %14 = vsyncpa [#allocation4], 0
    // Predicated region
    $region2: #{tpu_custom_call.1} parent=1 // pred_check
      _
    $region3: #{tpu_custom_call.1} parent=1 // pred_check_branch
      %16 = sbr.rel (0) target = $region5
    $region4: #{tpu_custom_call.1} parent=1 // pred_region
      %18 = vsyncadd [#allocation5], 0
      %s20 = sshll.u32 %s0, 4
      %s21 = int_to_ptr.hbm [resolvable:$true] %s20
      %23 = dma.hbm_to_smem %s21, 64, [#allocation2], [#allocation5]
    $region5: #{tpu_custom_call.1} parent=1 // pred_fallthru
      _
    // Predicated region
    $region6: #{tpu_custom_call.1} parent=1 // pred_check
      _
    $region7: #{tpu_custom_call.1} parent=1 // pred_check_branch
      %25 = sbr.rel (0) target = $region9
    $region8: #{tpu_custom_call.1} parent=1 // pred_region
      %27 = vsyncadd [#allocation8], 0
      %s29 = sshll.u32 %s1, 4
      %s30 = int_to_ptr.hbm [resolvable:$true] %s29
      %32 = dma.hbm_to_smem %s30, 16, [#allocation7], [#allocation8]
    $region9: #{tpu_custom_call.1} parent=1 // pred_fallthru
      _
    // Predicated region
    $region10: #{tpu_custom_call.1} parent=1 // pred_check
      _
    $region11: #{tpu_custom_call.1} parent=1 // pred_check_branch
      %34 = sbr.rel (0) target = $region13
    $region12: #{tpu_custom_call.1} parent=1 // pred_region
      %36 = vsyncadd [#allocation8], 0
      %s38 = sshll.u32 %s2, 4
      %s39 = int_to_ptr.hbm [resolvable:$true] %s38
      %41 = dma.hbm_to_smem %s39, 64, [#allocation9], [#allocation8]
    $region13: #{tpu_custom_call.1} parent=1 // pred_fallthru
      _
    // Predicated region
    $region14: #{tpu_custom_call.1} parent=1 // pred_check
      _
    $region15: #{tpu_custom_call.1} parent=1 // pred_check_branch
      %43 = sbr.rel (0) target = $region17
    $region16: #{tpu_custom_call.1} parent=1 // pred_region
      %45 = vsyncadd [#allocation6], 0
      %s47 = sshll.u32 %s3, 4
      %s48 = int_to_ptr.vmem [resolvable:$true] %s47
      %50 = dma.vmem_to_smem %s48, 16, [#allocation10], [#allocation6]
    $region17: #{tpu_custom_call.1} parent=1 // pred_fallthru
      _
    // Predicated region
    $region18: #{tpu_custom_call.1} parent=1 // pred_check
      _
    $region19: #{tpu_custom_call.1} parent=1 // pred_check_branch
      %52 = sbr.rel (0) target = $region21
    $region20: #{tpu_custom_call.1} parent=1 // pred_region
      %54 = vsyncadd [#allocation3], 0
      %s55 = sshll.u32 %s4, 4
      %s56 = int_to_ptr.hbm [resolvable:$true] %s55
      %s57 = sshll.u32 [#allocation11], 4
      %s58 = int_to_ptr.vmem [resolvable:$true] %s57
      %63 = dma.hbm_to_vmem [thread:$0]  %s56, 384, %s58, [#allocation3], 128, 128, 8
    $region21: #{tpu_custom_call.1} parent=1 // pred_fallthru
      _
    // Predicated region
    $region22: #{tpu_custom_call.1} parent=1 // pred_check
      _
    $region23: #{tpu_custom_call.1} parent=1 // pred_check_branch
      %65 = sbr.rel (0) target = $region25
    $region24: #{tpu_custom_call.1} parent=1 // pred_region
      %67 = dma.done [#allocation5], 64
    $region25: #{tpu_custom_call.1} parent=1 // pred_fallthru
      _
    // Predicated region
    $region26: #{tpu_custom_call.1} parent=1 // pred_check
      _
    $region27: #{tpu_custom_call.1} parent=1 // pred_check_branch
      %69 = sbr.rel (0) target = $region29
    $region28: #{tpu_custom_call.1} parent=1 // pred_region
      %71 = dma.done [#allocation8], 16
    $region29: #{tpu_custom_call.1} parent=1 // pred_fallthru
      _
    // Predicated region
    $region30: #{tpu_custom_call.1} parent=1 // pred_check
      _
    $region31: #{tpu_custom_call.1} parent=1 // pred_check_branch
      %73 = sbr.rel (0) target = $region33
    $region32: #{tpu_custom_call.1} parent=1 // pred_region
      %75 = dma.done [#allocation8], 64
    $region33: #{tpu_custom_call.1} parent=1 // pred_fallthru
      _
    // Predicated region
    $region34: #{tpu_custom_call.1} parent=1 // pred_check
      _
    $region35: #{tpu_custom_call.1} parent=1 // pred_check_branch
      %77 = sbr.rel (0) target = $region37
    $region36: #{tpu_custom_call.1} parent=1 // pred_region
      %79 = dma.done [#allocation6], 16
    $region37: #{tpu_custom_call.1} parent=1 // pred_fallthru
      _
    // Predicated region
    $region38: #{tpu_custom_call.1} parent=1 // pred_check
      _
    $region39: #{tpu_custom_call.1} parent=1 // pred_check_branch
      %81 = sbr.rel (0) target = $region41
    $region40: #{tpu_custom_call.1} parent=1 // pred_region
      %83 = dma.done [#allocation3], 384
    $region41: #{tpu_custom_call.1} parent=1 // pred_fallthru
      _
    %84 = sfence
    %v85 = vld [vmem:[#allocation11] sm:$0xff]
    %s86 = scalar_lea.vmem [#allocation11], 8
    %v87 = vld [vmem:[%s86] sm:$0xff]
    %s88 = scalar_lea.vmem [#allocation11], 16
    %v89 = vld [vmem:[%s88] sm:$0xff]
    %s90 = sld [smem:[#allocation7]]
    %s91 = sld [smem:[#allocation2]]
    %v92 = vstv %s91
    %v93 = vmul.f32 %v92, %v85
    %v94 = vstv %s90
    %v95 = vadd.f32 %v94, %v93
    %s96 = sld [smem:[#allocation2 + $0x1]]
    %v97 = vstv %s96
    %v98 = vmul.f32 %v97, %v87
    %v99 = vadd.f32 %v95, %v98
    %s100 = sld [smem:[#allocation2 + $0x2]]
    %v101 = vstv %s100
    %v102 = vmul.f32 %v101, %v89
    %v103 = vadd.f32 %v99, %v102
    %v104 = vmax.f32 %v103, 0.0
    %s105 = sld [smem:[#allocation7 + $0x1]]
    %s106 = sld [smem:[#allocation2 + $0x80]]
    %v107 = vstv %s106
    %v108 = vmul.f32 %v107, %v85
    %v109 = vstv %s105
    %v110 = vadd.f32 %v109, %v108
    %s111 = sld [smem:[#allocation2 + $0x81]]
    %v112 = vstv %s111
    %v113 = vmul.f32 %v112, %v87
    %v114 = vadd.f32 %v110, %v113
    %s115 = sld [smem:[#allocation2 + $0x82]]
    %v116 = vstv %s115
    %v117 = vmul.f32 %v116, %v89
    %v118 = vadd.f32 %v114, %v117
    %v119 = vmax.f32 %v118, 0.0
    %s120 = sld [smem:[#allocation7 + $0x2]]
    %s121 = sld [smem:[#allocation2 + $0x100]]
    %v122 = vstv %s121
    %v123 = vmul.f32 %v122, %v85
    %v124 = vstv %s120
    %v125 = vadd.f32 %v124, %v123
    %s126 = sld [smem:[#allocation2 + $0x101]]
    %v127 = vstv %s126
    %v128 = vmul.f32 %v127, %v87
    %v129 = vadd.f32 %v125, %v128
    %s130 = sld [smem:[#allocation2 + $0x102]]
    %v131 = vstv %s130
    %v132 = vmul.f32 %v131, %v89
    %v133 = vadd.f32 %v129, %v132
    %v134 = vmax.f32 %v133, 0.0
    %s135 = sld [smem:[#allocation10]]
    %s136 = sld [smem:[#allocation9]]
    %v137 = vstv %s136
    %v138 = vmul.f32 %v137, %v104
    %v139 = vstv %s135
    %v140 = vadd.f32 %v139, %v138
    %s141 = sld [smem:[#allocation9 + $0x1]]
    %v142 = vstv %s141
    %v143 = vmul.f32 %v142, %v119
    %v144 = vadd.f32 %v140, %v143
    %s145 = sld [smem:[#allocation9 + $0x2]]
    %v146 = vstv %s145
    %v147 = vmul.f32 %v146, %v134
    %v148 = vadd.f32 %v144, %v147
    %149 = vst [vmem:[#allocation12] sm:$0xff] %v148
    %s150 = sld [smem:[#allocation10 + $0x1]]
    %s151 = sld [smem:[#allocation9 + $0x80]]
    %v152 = vstv %s151
    %v153 = vmul.f32 %v152, %v104
    %v154 = vstv %s150
    %v155 = vadd.f32 %v154, %v153
    %s156 = sld [smem:[#allocation9 + $0x81]]
    %v157 = vstv %s156
    %v158 = vmul.f32 %v157, %v119
    %v159 = vadd.f32 %v155, %v158
    %s160 = sld [smem:[#allocation9 + $0x82]]
    %v161 = vstv %s160
    %v162 = vmul.f32 %v161, %v134
    %v163 = vadd.f32 %v159, %v162
    %s164 = scalar_lea.vmem [#allocation12], 8
    %165 = vst [vmem:[%s164] sm:$0xff] %v163
    %s166 = sld [smem:[#allocation10 + $0x2]]
    %s167 = sld [smem:[#allocation9 + $0x100]]
    %v168 = vstv %s167
    %v169 = vmul.f32 %v168, %v104
    %v170 = vstv %s166
    %v171 = vadd.f32 %v170, %v169
    %s172 = sld [smem:[#allocation9 + $0x101]]
    %v173 = vstv %s172
    %v174 = vmul.f32 %v173, %v119
    %v175 = vadd.f32 %v171, %v174
    %s176 = sld [smem:[#allocation9 + $0x102]]
    %v177 = vstv %s176
    %v178 = vmul.f32 %v177, %v134
    %v179 = vadd.f32 %v175, %v178
    %s180 = scalar_lea.vmem [#allocation12], 16
    %181 = vst [vmem:[%s180] sm:$0xff] %v179
    // Predicated region
    $region42: #{tpu_custom_call.1} parent=1 // pred_check
      _
    $region43: #{tpu_custom_call.1} parent=1 // pred_check_branch
      %183 = sbr.rel (0) target = $region45
    $region44: #{tpu_custom_call.1} parent=1 // pred_region
      %185 = vsyncadd [#allocation4], 0
      %s186 = sshll.u32 [#allocation12], 4
      %s187 = int_to_ptr.vmem [resolvable:$true] %s186
      %s188 = sshll.u32 %s5, 4
      %s189 = int_to_ptr.hbm [resolvable:$true] %s188
      %194 = dma.vmem_to_hbm [thread:$0]  %s187, 384, %s189, [#allocation4], 128, 128, 8
    $region45: #{tpu_custom_call.1} parent=1 // pred_fallthru
      _
    // Predicated region
    $region46: #{tpu_custom_call.1} parent=1 // pred_check
      _
    $region47: #{tpu_custom_call.1} parent=1 // pred_check_branch
      %196 = sbr.rel (0) target = $region49
    $region48: #{tpu_custom_call.1} parent=1 // pred_region
      %198 = dma.done [#allocation4], 384
    $region49: #{tpu_custom_call.1} parent=1 // pred_fallthru
      _
    %199 = vsyncpa [#allocation3], 1
    %200 = vsyncpa [#allocation4], 1
    %201 = vsyncpa [#allocation5], 1
    %202 = vsyncpa [#allocation8], 1
    %203 = vsyncpa [#allocation6], 1

</llo_original>
